<compile_context>
chip_gen: v7x
topology: tpu7x:2x2x1
jax: 0.10.0
libtpu: 0.0.40
codegen_flags: <defaults>
</compile_context>

<pallas_src>
import jax
import jax.numpy as jnp
import numpy as np
from jax import lax
from jax.experimental import pallas as pl
from jax.experimental.pallas import tpu as pltpu


def _word2vec_kernel(idx_ref, table_hbm, w_ref, out_ref,
                     emb_buf, m_sc, s_sc, copy_sems):
    # idx_ref   : (B,)     int32  SMEM (scalar prefetch: all token ids)
    # table_hbm : (V, E)   f32    HBM  (raw ref, manual DMA gather)
    # w_ref     : (tv, E)  f32    VMEM (streamed expand_fc weight tile, PyTorch layout)
    # out_ref   : (tb, V)  f32    VMEM (resident output row-block for this batch tile)
    # emb_buf   : (tb, E)  f32    VMEM scratch (gathered embedding rows)
    # m_sc,s_sc : (tb, 1)  f32    VMEM scratch (online LSE running max / sum)
    # copy_sems : (tb,)    DMA semaphores
    i = pl.program_id(0)          # batch tile
    j = pl.program_id(1)          # vocab tile
    nj = pl.num_programs(1)
    tb, _ = emb_buf.shape
    tv = w_ref.shape[0]

    # ---- Per-batch-tile init (first vocab step only): gather + reset LSE state. ----
    @pl.when(j == 0)
    def _init():
        for r in range(tb):
            tok = idx_ref[i * tb + r]
            pltpu.make_async_copy(table_hbm.at[tok], emb_buf.at[r],
                                  copy_sems.at[r]).start()
        for r in range(tb):
            pltpu.make_async_copy(table_hbm.at[0], emb_buf.at[r],
                                  copy_sems.at[r]).wait()
        m_sc[...] = jnp.full_like(m_sc, -jnp.inf)
        s_sc[...] = jnp.zeros_like(s_sc)

    # ---- expand_fc tile: (tb, E) x (tv, E)^T -> (tb, tv), bf16 in / f32 acc. ----
    emb_bf = emb_buf[...].astype(jnp.bfloat16)
    w_bf = w_ref[...].astype(jnp.bfloat16)
    logits = lax.dot_general(
        emb_bf, w_bf,
        dimension_numbers=(((1,), (1,)), ((), ())),      # contract over E on both sides
        preferred_element_type=jnp.float32)               # (tb, tv) f32

    # Stash raw logits into the resident output block (128-aligned lane offset).
    col = pl.multiple_of(j * tv, 128)
    out_ref[:, pl.ds(col, tv)] = logits

    # ---- Online log-sum-exp update (numerically stable, f32). ----
    m_old = m_sc[...]
    m_new = jnp.maximum(m_old, jnp.max(logits, axis=-1, keepdims=True))
    s_sc[...] = (s_sc[...] * jnp.exp(m_old - m_new)
                 + jnp.sum(jnp.exp(logits - m_new), axis=-1, keepdims=True))
    m_sc[...] = m_new

    # ---- Finalize: subtract the per-row LSE from the whole resident row. ----
    @pl.when(j == nj - 1)
    def _finalize():
        lse = m_sc[...] + jnp.log(s_sc[...])              # (tb, 1)
        out_ref[...] = out_ref[...] - lse


def word2vec_forward(center_word_idx, embed_table, expand_w, *, tb=8, tv=128):
    """Forward pass of the PyTorch Word2Vec module.

    center_word_idx: (B,)   integer token ids
    embed_table    : (V, E) f32  (nn.Embedding.weight)
    expand_w       : (V, E) f32  (nn.Linear(E, V, bias=False).weight, PyTorch layout)
    returns        : (B, V) f32  log-probabilities
    """
    B = center_word_idx.shape[0]
    V, E = embed_table.shape
    assert expand_w.shape == (V, E)
    assert B % tb == 0, "batch must be divisible by the batch tile"
    assert V % tv == 0 and tv % 128 == 0, "vocab tile must be a 128-multiple divisor of V"

    ids = center_word_idx.astype(jnp.int32)
    grid = (B // tb, V // tv)

    out = pl.pallas_call(
        _word2vec_kernel,
        out_shape=jax.ShapeDtypeStruct((B, V), jnp.float32),
        grid_spec=pltpu.PrefetchScalarGridSpec(
            num_scalar_prefetch=1,                               # token ids -> SMEM
            grid=grid,
            in_specs=[
                pl.BlockSpec(memory_space=pl.ANY),               # embedding table stays in HBM
                pl.BlockSpec((tv, E), lambda i, j, idx: (j, 0)),  # streamed weight tile
            ],
            out_specs=pl.BlockSpec((tb, V), lambda i, j, idx: (i, 0)),  # resident row block
            scratch_shapes=[
                pltpu.VMEM((tb, E), jnp.float32),                # gathered embeddings
                pltpu.VMEM((tb, 1), jnp.float32),                # running max
                pltpu.VMEM((tb, 1), jnp.float32),                # running sum(exp)
                pltpu.SemaphoreType.DMA((tb,)),                  # one sem per gathered row
            ],
        ),
        compiler_params=pltpu.CompilerParams(
            dimension_semantics=("parallel", "arbitrary")),
    )(ids, embed_table, expand_w)
    return out


def _reference(center_word_idx, embed_table, expand_w):
    x = embed_table[center_word_idx]          # (B, E)
    logits = x @ expand_w.T                   # (B, V)
    return jax.nn.log_softmax(logits, axis=-1)


if __name__ == "__main__":
    vocab_size = 512
    embedding_size = 128
    batch = 16

    key = jax.random.PRNGKey(0)
    k_emb, k_fc, k_idx = jax.random.split(key, 3)

    # nn.Embedding init ~ N(0, 1); nn.Linear (no bias) init ~ U(-1/sqrt(E), 1/sqrt(E))
    embed_table = jax.random.normal(k_emb, (vocab_size, embedding_size), dtype=jnp.float32)
    bound = 1.0 / np.sqrt(embedding_size)
    expand_w = jax.random.uniform(k_fc, (vocab_size, embedding_size),
                                  minval=-bound, maxval=bound, dtype=jnp.float32)

    center_word_idx = jax.random.randint(k_idx, (batch,), 0, vocab_size, dtype=jnp.int32)

    # tb=8 -> 2 parallel batch tiles (megacore); tv=128 -> 4 streamed vocab tiles
    # (exercises the online log-sum-exp path).
    out = word2vec_forward(center_word_idx, embed_table, expand_w, tb=8, tv=128)
    out = jax.block_until_ready(out)

    ref = _reference(center_word_idx, embed_table, expand_w)
    assert out.shape == (batch, vocab_size)
    # bf16 matmul inputs (f32 accumulation) -> loosened tolerance vs the pure-f32 reference.
    assert np.allclose(np.asarray(out), np.asarray(ref), atol=3e-2, rtol=0), \
        np.max(np.abs(np.asarray(out) - np.asarray(ref)))
    # log_softmax property: rows must exponentiate-and-sum to 1 (checks the online LSE exactly).
    assert np.allclose(np.exp(np.asarray(out)).sum(axis=-1), 1.0, atol=1e-4)

    print("KERNEL_OK")
</pallas_src>

<mosaic_0001>
module attributes {stable_mosaic.version = 11 : i64} {
  func.func @_word2vec_kernel(%arg0: i32, %arg1: i32, %arg2: memref<16xi32, #tpu.memory_space<smem>>, %arg3: memref<512x128xf32, #tpu.memory_space<any>>, %arg4: memref<128x128xf32, #tpu.memory_space<vmem>>, %arg5: memref<8x512xf32, #tpu.memory_space<vmem>>, %arg6: memref<8x128xf32, #tpu.memory_space<vmem>>, %arg7: memref<8x1xf32, #tpu.memory_space<vmem>>, %arg8: memref<8x1xf32, #tpu.memory_space<vmem>>, %arg9: memref<8x!tpu.dma_semaphore, #tpu.memory_space<semaphore_mem>>) attributes {dimension_semantics = [#tpu.dimension_semantics<parallel>, #tpu.dimension_semantics<arbitrary>], iteration_bounds = array<i64: 2, 4>, scalar_prefetch = 1 : i64, scratch_operands = 4 : i64, tpu.core_type = #tpu.core_type<tc>, window_params = [{}, {transform_indices = @transform_1, window_bounds = array<i64: 128, 128>}, {transform_indices = @transform_2, window_bounds = array<i64: 8, 512>}]} {
    %c0_i32 = arith.constant 0 : i32
    %0 = arith.cmpi eq, %arg1, %c0_i32 : i32
    %1 = arith.extui %0 : i1 to i32
    %c0_i32_0 = arith.constant 0 : i32
    %2 = arith.cmpi ne, %1, %c0_i32_0 : i32
    scf.if %2 {
      %c8_i32 = arith.constant 8 : i32
      %31 = arith.muli %arg0, %c8_i32 : i32
      %c0_i32_16 = arith.constant 0 : i32
      %32 = arith.addi %31, %c0_i32_16 : i32
      %33 = arith.index_cast %32 : i32 to index
      %34 = memref.load %arg2[%33] : memref<16xi32, #tpu.memory_space<smem>>
      %c0_i32_17 = arith.constant 0 : i32
      %c0_i32_18 = arith.constant 0 : i32
      %c0_i32_19 = arith.constant 0 : i32
      %35 = tpu.memref_slice %arg3[%34, %c0_i32_19] : memref<512x128xf32, #tpu.memory_space<any>> -> memref<1x128xf32, #tpu.memory_space<any>>
      %36 = tpu.memref_squeeze %35 : memref<1x128xf32, #tpu.memory_space<any>> -> memref<128xf32, #tpu.memory_space<any>>
      %c0_i32_20 = arith.constant 0 : i32
      %37 = tpu.memref_slice %arg6[%c0_i32_17, %c0_i32_20] : memref<8x128xf32, #tpu.memory_space<vmem>> -> memref<1x128xf32, #tpu.memory_space<vmem>>
      %38 = tpu.memref_squeeze %37 : memref<1x128xf32, #tpu.memory_space<vmem>> -> memref<128xf32, #tpu.memory_space<vmem>>
      %39 = tpu.memref_slice %arg9[%c0_i32_18] : memref<8x!tpu.dma_semaphore, #tpu.memory_space<semaphore_mem>> -> memref<1x!tpu.dma_semaphore, #tpu.memory_space<semaphore_mem>>
      %40 = tpu.memref_squeeze %39 : memref<1x!tpu.dma_semaphore, #tpu.memory_space<semaphore_mem>> -> memref<!tpu.dma_semaphore, #tpu.memory_space<semaphore_mem>>
      tpu.enqueue_dma source(%36 : memref<128xf32, #tpu.memory_space<any>>) target(%38 : memref<128xf32, #tpu.memory_space<vmem>>) target_semaphore(%40 : memref<!tpu.dma_semaphore, #tpu.memory_space<semaphore_mem>>)
      %c8_i32_21 = arith.constant 8 : i32
      %41 = arith.muli %arg0, %c8_i32_21 : i32
      %c1_i32 = arith.constant 1 : i32
      %42 = arith.addi %41, %c1_i32 : i32
      %43 = arith.index_cast %42 : i32 to index
      %44 = memref.load %arg2[%43] : memref<16xi32, #tpu.memory_space<smem>>
      %c1_i32_22 = arith.constant 1 : i32
      %c1_i32_23 = arith.constant 1 : i32
      %c0_i32_24 = arith.constant 0 : i32
      %45 = tpu.memref_slice %arg3[%44, %c0_i32_24] : memref<512x128xf32, #tpu.memory_space<any>> -> memref<1x128xf32, #tpu.memory_space<any>>
      %46 = tpu.memref_squeeze %45 : memref<1x128xf32, #tpu.memory_space<any>> -> memref<128xf32, #tpu.memory_space<any>>
      %c0_i32_25 = arith.constant 0 : i32
      %47 = tpu.memref_slice %arg6[%c1_i32_22, %c0_i32_25] : memref<8x128xf32, #tpu.memory_space<vmem>> -> memref<1x128xf32, #tpu.memory_space<vmem>>
      %48 = tpu.memref_squeeze %47 : memref<1x128xf32, #tpu.memory_space<vmem>> -> memref<128xf32, #tpu.memory_space<vmem>>
      %49 = tpu.memref_slice %arg9[%c1_i32_23] : memref<8x!tpu.dma_semaphore, #tpu.memory_space<semaphore_mem>> -> memref<1x!tpu.dma_semaphore, #tpu.memory_space<semaphore_mem>>
      %50 = tpu.memref_squeeze %49 : memref<1x!tpu.dma_semaphore, #tpu.memory_space<semaphore_mem>> -> memref<!tpu.dma_semaphore, #tpu.memory_space<semaphore_mem>>
      tpu.enqueue_dma source(%46 : memref<128xf32, #tpu.memory_space<any>>) target(%48 : memref<128xf32, #tpu.memory_space<vmem>>) target_semaphore(%50 : memref<!tpu.dma_semaphore, #tpu.memory_space<semaphore_mem>>)
      %c8_i32_26 = arith.constant 8 : i32
      %51 = arith.muli %arg0, %c8_i32_26 : i32
      %c2_i32 = arith.constant 2 : i32
      %52 = arith.addi %51, %c2_i32 : i32
      %53 = arith.index_cast %52 : i32 to index
      %54 = memref.load %arg2[%53] : memref<16xi32, #tpu.memory_space<smem>>
      %c2_i32_27 = arith.constant 2 : i32
      %c2_i32_28 = arith.constant 2 : i32
      %c0_i32_29 = arith.constant 0 : i32
      %55 = tpu.memref_slice %arg3[%54, %c0_i32_29] : memref<512x128xf32, #tpu.memory_space<any>> -> memref<1x128xf32, #tpu.memory_space<any>>
      %56 = tpu.memref_squeeze %55 : memref<1x128xf32, #tpu.memory_space<any>> -> memref<128xf32, #tpu.memory_space<any>>
      %c0_i32_30 = arith.constant 0 : i32
      %57 = tpu.memref_slice %arg6[%c2_i32_27, %c0_i32_30] : memref<8x128xf32, #tpu.memory_space<vmem>> -> memref<1x128xf32, #tpu.memory_space<vmem>>
      %58 = tpu.memref_squeeze %57 : memref<1x128xf32, #tpu.memory_space<vmem>> -> memref<128xf32, #tpu.memory_space<vmem>>
      %59 = tpu.memref_slice %arg9[%c2_i32_28] : memref<8x!tpu.dma_semaphore, #tpu.memory_space<semaphore_mem>> -> memref<1x!tpu.dma_semaphore, #tpu.memory_space<semaphore_mem>>
      %60 = tpu.memref_squeeze %59 : memref<1x!tpu.dma_semaphore, #tpu.memory_space<semaphore_mem>> -> memref<!tpu.dma_semaphore, #tpu.memory_space<semaphore_mem>>
      tpu.enqueue_dma source(%56 : memref<128xf32, #tpu.memory_space<any>>) target(%58 : memref<128xf32, #tpu.memory_space<vmem>>) target_semaphore(%60 : memref<!tpu.dma_semaphore, #tpu.memory_space<semaphore_mem>>)
      %c8_i32_31 = arith.constant 8 : i32
      %61 = arith.muli %arg0, %c8_i32_31 : i32
      %c3_i32_32 = arith.constant 3 : i32
      %62 = arith.addi %61, %c3_i32_32 : i32
      %63 = arith.index_cast %62 : i32 to index
      %64 = memref.load %arg2[%63] : memref<16xi32, #tpu.memory_space<smem>>
      %c3_i32_33 = arith.constant 3 : i32
      %c3_i32_34 = arith.constant 3 : i32
      %c0_i32_35 = arith.constant 0 : i32
      %65 = tpu.memref_slice %arg3[%64, %c0_i32_35] : memref<512x128xf32, #tpu.memory_space<any>> -> memref<1x128xf32, #tpu.memory_space<any>>
      %66 = tpu.memref_squeeze %65 : memref<1x128xf32, #tpu.memory_space<any>> -> memref<128xf32, #tpu.memory_space<any>>
      %c0_i32_36 = arith.constant 0 : i32
      %67 = tpu.memref_slice %arg6[%c3_i32_33, %c0_i32_36] : memref<8x128xf32, #tpu.memory_space<vmem>> -> memref<1x128xf32, #tpu.memory_space<vmem>>
      %68 = tpu.memref_squeeze %67 : memref<1x128xf32, #tpu.memory_space<vmem>> -> memref<128xf32, #tpu.memory_space<vmem>>
      %69 = tpu.memref_slice %arg9[%c3_i32_34] : memref<8x!tpu.dma_semaphore, #tpu.memory_space<semaphore_mem>> -> memref<1x!tpu.dma_semaphore, #tpu.memory_space<semaphore_mem>>
      %70 = tpu.memref_squeeze %69 : memref<1x!tpu.dma_semaphore, #tpu.memory_space<semaphore_mem>> -> memref<!tpu.dma_semaphore, #tpu.memory_space<semaphore_mem>>
      tpu.enqueue_dma source(%66 : memref<128xf32, #tpu.memory_space<any>>) target(%68 : memref<128xf32, #tpu.memory_space<vmem>>) target_semaphore(%70 : memref<!tpu.dma_semaphore, #tpu.memory_space<semaphore_mem>>)
      %c8_i32_37 = arith.constant 8 : i32
      %71 = arith.muli %arg0, %c8_i32_37 : i32
      %c4_i32 = arith.constant 4 : i32
      %72 = arith.addi %71, %c4_i32 : i32
      %73 = arith.index_cast %72 : i32 to index
      %74 = memref.load %arg2[%73] : memref<16xi32, #tpu.memory_space<smem>>
      %c4_i32_38 = arith.constant 4 : i32
      %c4_i32_39 = arith.constant 4 : i32
      %c0_i32_40 = arith.constant 0 : i32
      %75 = tpu.memref_slice %arg3[%74, %c0_i32_40] : memref<512x128xf32, #tpu.memory_space<any>> -> memref<1x128xf32, #tpu.memory_space<any>>
      %76 = tpu.memref_squeeze %75 : memref<1x128xf32, #tpu.memory_space<any>> -> memref<128xf32, #tpu.memory_space<any>>
      %c0_i32_41 = arith.constant 0 : i32
      %77 = tpu.memref_slice %arg6[%c4_i32_38, %c0_i32_41] : memref<8x128xf32, #tpu.memory_space<vmem>> -> memref<1x128xf32, #tpu.memory_space<vmem>>
      %78 = tpu.memref_squeeze %77 : memref<1x128xf32, #tpu.memory_space<vmem>> -> memref<128xf32, #tpu.memory_space<vmem>>
      %79 = tpu.memref_slice %arg9[%c4_i32_39] : memref<8x!tpu.dma_semaphore, #tpu.memory_space<semaphore_mem>> -> memref<1x!tpu.dma_semaphore, #tpu.memory_space<semaphore_mem>>
      %80 = tpu.memref_squeeze %79 : memref<1x!tpu.dma_semaphore, #tpu.memory_space<semaphore_mem>> -> memref<!tpu.dma_semaphore, #tpu.memory_space<semaphore_mem>>
      tpu.enqueue_dma source(%76 : memref<128xf32, #tpu.memory_space<any>>) target(%78 : memref<128xf32, #tpu.memory_space<vmem>>) target_semaphore(%80 : memref<!tpu.dma_semaphore, #tpu.memory_space<semaphore_mem>>)
      %c8_i32_42 = arith.constant 8 : i32
      %81 = arith.muli %arg0, %c8_i32_42 : i32
      %c5_i32 = arith.constant 5 : i32
      %82 = arith.addi %81, %c5_i32 : i32
      %83 = arith.index_cast %82 : i32 to index
      %84 = memref.load %arg2[%83] : memref<16xi32, #tpu.memory_space<smem>>
      %c5_i32_43 = arith.constant 5 : i32
      %c5_i32_44 = arith.constant 5 : i32
      %c0_i32_45 = arith.constant 0 : i32
      %85 = tpu.memref_slice %arg3[%84, %c0_i32_45] : memref<512x128xf32, #tpu.memory_space<any>> -> memref<1x128xf32, #tpu.memory_space<any>>
      %86 = tpu.memref_squeeze %85 : memref<1x128xf32, #tpu.memory_space<any>> -> memref<128xf32, #tpu.memory_space<any>>
      %c0_i32_46 = arith.constant 0 : i32
      %87 = tpu.memref_slice %arg6[%c5_i32_43, %c0_i32_46] : memref<8x128xf32, #tpu.memory_space<vmem>> -> memref<1x128xf32, #tpu.memory_space<vmem>>
      %88 = tpu.memref_squeeze %87 : memref<1x128xf32, #tpu.memory_space<vmem>> -> memref<128xf32, #tpu.memory_space<vmem>>
      %89 = tpu.memref_slice %arg9[%c5_i32_44] : memref<8x!tpu.dma_semaphore, #tpu.memory_space<semaphore_mem>> -> memref<1x!tpu.dma_semaphore, #tpu.memory_space<semaphore_mem>>
      %90 = tpu.memref_squeeze %89 : memref<1x!tpu.dma_semaphore, #tpu.memory_space<semaphore_mem>> -> memref<!tpu.dma_semaphore, #tpu.memory_space<semaphore_mem>>
      tpu.enqueue_dma source(%86 : memref<128xf32, #tpu.memory_space<any>>) target(%88 : memref<128xf32, #tpu.memory_space<vmem>>) target_semaphore(%90 : memref<!tpu.dma_semaphore, #tpu.memory_space<semaphore_mem>>)
      %c8_i32_47 = arith.constant 8 : i32
      %91 = arith.muli %arg0, %c8_i32_47 : i32
      %c6_i32 = arith.constant 6 : i32
      %92 = arith.addi %91, %c6_i32 : i32
      %93 = arith.index_cast %92 : i32 to index
      %94 = memref.load %arg2[%93] : memref<16xi32, #tpu.memory_space<smem>>
      %c6_i32_48 = arith.constant 6 : i32
      %c6_i32_49 = arith.constant 6 : i32
      %c0_i32_50 = arith.constant 0 : i32
      %95 = tpu.memref_slice %arg3[%94, %c0_i32_50] : memref<512x128xf32, #tpu.memory_space<any>> -> memref<1x128xf32, #tpu.memory_space<any>>
      %96 = tpu.memref_squeeze %95 : memref<1x128xf32, #tpu.memory_space<any>> -> memref<128xf32, #tpu.memory_space<any>>
      %c0_i32_51 = arith.constant 0 : i32
      %97 = tpu.memref_slice %arg6[%c6_i32_48, %c0_i32_51] : memref<8x128xf32, #tpu.memory_space<vmem>> -> memref<1x128xf32, #tpu.memory_space<vmem>>
      %98 = tpu.memref_squeeze %97 : memref<1x128xf32, #tpu.memory_space<vmem>> -> memref<128xf32, #tpu.memory_space<vmem>>
      %99 = tpu.memref_slice %arg9[%c6_i32_49] : memref<8x!tpu.dma_semaphore, #tpu.memory_space<semaphore_mem>> -> memref<1x!tpu.dma_semaphore, #tpu.memory_space<semaphore_mem>>
      %100 = tpu.memref_squeeze %99 : memref<1x!tpu.dma_semaphore, #tpu.memory_space<semaphore_mem>> -> memref<!tpu.dma_semaphore, #tpu.memory_space<semaphore_mem>>
      tpu.enqueue_dma source(%96 : memref<128xf32, #tpu.memory_space<any>>) target(%98 : memref<128xf32, #tpu.memory_space<vmem>>) target_semaphore(%100 : memref<!tpu.dma_semaphore, #tpu.memory_space<semaphore_mem>>)
      %c8_i32_52 = arith.constant 8 : i32
      %101 = arith.muli %arg0, %c8_i32_52 : i32
      %c7_i32 = arith.constant 7 : i32
      %102 = arith.addi %101, %c7_i32 : i32
      %103 = arith.index_cast %102 : i32 to index
      %104 = memref.load %arg2[%103] : memref<16xi32, #tpu.memory_space<smem>>
      %c7_i32_53 = arith.constant 7 : i32
      %c7_i32_54 = arith.constant 7 : i32
      %c0_i32_55 = arith.constant 0 : i32
      %105 = tpu.memref_slice %arg3[%104, %c0_i32_55] : memref<512x128xf32, #tpu.memory_space<any>> -> memref<1x128xf32, #tpu.memory_space<any>>
      %106 = tpu.memref_squeeze %105 : memref<1x128xf32, #tpu.memory_space<any>> -> memref<128xf32, #tpu.memory_space<any>>
      %c0_i32_56 = arith.constant 0 : i32
      %107 = tpu.memref_slice %arg6[%c7_i32_53, %c0_i32_56] : memref<8x128xf32, #tpu.memory_space<vmem>> -> memref<1x128xf32, #tpu.memory_space<vmem>>
      %108 = tpu.memref_squeeze %107 : memref<1x128xf32, #tpu.memory_space<vmem>> -> memref<128xf32, #tpu.memory_space<vmem>>
      %109 = tpu.memref_slice %arg9[%c7_i32_54] : memref<8x!tpu.dma_semaphore, #tpu.memory_space<semaphore_mem>> -> memref<1x!tpu.dma_semaphore, #tpu.memory_space<semaphore_mem>>
      %110 = tpu.memref_squeeze %109 : memref<1x!tpu.dma_semaphore, #tpu.memory_space<semaphore_mem>> -> memref<!tpu.dma_semaphore, #tpu.memory_space<semaphore_mem>>
      tpu.enqueue_dma source(%106 : memref<128xf32, #tpu.memory_space<any>>) target(%108 : memref<128xf32, #tpu.memory_space<vmem>>) target_semaphore(%110 : memref<!tpu.dma_semaphore, #tpu.memory_space<semaphore_mem>>)
      %c0_i32_57 = arith.constant 0 : i32
      %c0_i32_58 = arith.constant 0 : i32
      %c0_i32_59 = arith.constant 0 : i32
      %c0_i32_60 = arith.constant 0 : i32
      %111 = tpu.memref_slice %arg3[%c0_i32_57, %c0_i32_60] : memref<512x128xf32, #tpu.memory_space<any>> -> memref<1x128xf32, #tpu.memory_space<any>>
      %112 = tpu.memref_squeeze %111 : memref<1x128xf32, #tpu.memory_space<any>> -> memref<128xf32, #tpu.memory_space<any>>
      %c0_i32_61 = arith.constant 0 : i32
      %113 = tpu.memref_slice %arg6[%c0_i32_58, %c0_i32_61] : memref<8x128xf32, #tpu.memory_space<vmem>> -> memref<1x128xf32, #tpu.memory_space<vmem>>
      %114 = tpu.memref_squeeze %113 : memref<1x128xf32, #tpu.memory_space<vmem>> -> memref<128xf32, #tpu.memory_space<vmem>>
      %115 = tpu.memref_slice %arg9[%c0_i32_59] : memref<8x!tpu.dma_semaphore, #tpu.memory_space<semaphore_mem>> -> memref<1x!tpu.dma_semaphore, #tpu.memory_space<semaphore_mem>>
      %116 = tpu.memref_squeeze %115 : memref<1x!tpu.dma_semaphore, #tpu.memory_space<semaphore_mem>> -> memref<!tpu.dma_semaphore, #tpu.memory_space<semaphore_mem>>
      tpu.wait_dma2 semaphore(%116 : memref<!tpu.dma_semaphore, #tpu.memory_space<semaphore_mem>>) src(%112 : memref<128xf32, #tpu.memory_space<any>>) dst(%114 : memref<128xf32, #tpu.memory_space<vmem>>)
      %c0_i32_62 = arith.constant 0 : i32
      %c1_i32_63 = arith.constant 1 : i32
      %c1_i32_64 = arith.constant 1 : i32
      %c0_i32_65 = arith.constant 0 : i32
      %117 = tpu.memref_slice %arg3[%c0_i32_62, %c0_i32_65] : memref<512x128xf32, #tpu.memory_space<any>> -> memref<1x128xf32, #tpu.memory_space<any>>
      %118 = tpu.memref_squeeze %117 : memref<1x128xf32, #tpu.memory_space<any>> -> memref<128xf32, #tpu.memory_space<any>>
      %c0_i32_66 = arith.constant 0 : i32
      %119 = tpu.memref_slice %arg6[%c1_i32_63, %c0_i32_66] : memref<8x128xf32, #tpu.memory_space<vmem>> -> memref<1x128xf32, #tpu.memory_space<vmem>>
      %120 = tpu.memref_squeeze %119 : memref<1x128xf32, #tpu.memory_space<vmem>> -> memref<128xf32, #tpu.memory_space<vmem>>
      %121 = tpu.memref_slice %arg9[%c1_i32_64] : memref<8x!tpu.dma_semaphore, #tpu.memory_space<semaphore_mem>> -> memref<1x!tpu.dma_semaphore, #tpu.memory_space<semaphore_mem>>
      %122 = tpu.memref_squeeze %121 : memref<1x!tpu.dma_semaphore, #tpu.memory_space<semaphore_mem>> -> memref<!tpu.dma_semaphore, #tpu.memory_space<semaphore_mem>>
      tpu.wait_dma2 semaphore(%122 : memref<!tpu.dma_semaphore, #tpu.memory_space<semaphore_mem>>) src(%118 : memref<128xf32, #tpu.memory_space<any>>) dst(%120 : memref<128xf32, #tpu.memory_space<vmem>>)
      %c0_i32_67 = arith.constant 0 : i32
      %c2_i32_68 = arith.constant 2 : i32
      %c2_i32_69 = arith.constant 2 : i32
      %c0_i32_70 = arith.constant 0 : i32
      %123 = tpu.memref_slice %arg3[%c0_i32_67, %c0_i32_70] : memref<512x128xf32, #tpu.memory_space<any>> -> memref<1x128xf32, #tpu.memory_space<any>>
      %124 = tpu.memref_squeeze %123 : memref<1x128xf32, #tpu.memory_space<any>> -> memref<128xf32, #tpu.memory_space<any>>
      %c0_i32_71 = arith.constant 0 : i32
      %125 = tpu.memref_slice %arg6[%c2_i32_68, %c0_i32_71] : memref<8x128xf32, #tpu.memory_space<vmem>> -> memref<1x128xf32, #tpu.memory_space<vmem>>
      %126 = tpu.memref_squeeze %125 : memref<1x128xf32, #tpu.memory_space<vmem>> -> memref<128xf32, #tpu.memory_space<vmem>>
      %127 = tpu.memref_slice %arg9[%c2_i32_69] : memref<8x!tpu.dma_semaphore, #tpu.memory_space<semaphore_mem>> -> memref<1x!tpu.dma_semaphore, #tpu.memory_space<semaphore_mem>>
      %128 = tpu.memref_squeeze %127 : memref<1x!tpu.dma_semaphore, #tpu.memory_space<semaphore_mem>> -> memref<!tpu.dma_semaphore, #tpu.memory_space<semaphore_mem>>
      tpu.wait_dma2 semaphore(%128 : memref<!tpu.dma_semaphore, #tpu.memory_space<semaphore_mem>>) src(%124 : memref<128xf32, #tpu.memory_space<any>>) dst(%126 : memref<128xf32, #tpu.memory_space<vmem>>)
      %c0_i32_72 = arith.constant 0 : i32
      %c3_i32_73 = arith.constant 3 : i32
      %c3_i32_74 = arith.constant 3 : i32
      %c0_i32_75 = arith.constant 0 : i32
      %129 = tpu.memref_slice %arg3[%c0_i32_72, %c0_i32_75] : memref<512x128xf32, #tpu.memory_space<any>> -> memref<1x128xf32, #tpu.memory_space<any>>
      %130 = tpu.memref_squeeze %129 : memref<1x128xf32, #tpu.memory_space<any>> -> memref<128xf32, #tpu.memory_space<any>>
      %c0_i32_76 = arith.constant 0 : i32
      %131 = tpu.memref_slice %arg6[%c3_i32_73, %c0_i32_76] : memref<8x128xf32, #tpu.memory_space<vmem>> -> memref<1x128xf32, #tpu.memory_space<vmem>>
      %132 = tpu.memref_squeeze %131 : memref<1x128xf32, #tpu.memory_space<vmem>> -> memref<128xf32, #tpu.memory_space<vmem>>
      %133 = tpu.memref_slice %arg9[%c3_i32_74] : memref<8x!tpu.dma_semaphore, #tpu.memory_space<semaphore_mem>> -> memref<1x!tpu.dma_semaphore, #tpu.memory_space<semaphore_mem>>
      %134 = tpu.memref_squeeze %133 : memref<1x!tpu.dma_semaphore, #tpu.memory_space<semaphore_mem>> -> memref<!tpu.dma_semaphore, #tpu.memory_space<semaphore_mem>>
      tpu.wait_dma2 semaphore(%134 : memref<!tpu.dma_semaphore, #tpu.memory_space<semaphore_mem>>) src(%130 : memref<128xf32, #tpu.memory_space<any>>) dst(%132 : memref<128xf32, #tpu.memory_space<vmem>>)
      %c0_i32_77 = arith.constant 0 : i32
      %c4_i32_78 = arith.constant 4 : i32
      %c4_i32_79 = arith.constant 4 : i32
      %c0_i32_80 = arith.constant 0 : i32
      %135 = tpu.memref_slice %arg3[%c0_i32_77, %c0_i32_80] : memref<512x128xf32, #tpu.memory_space<any>> -> memref<1x128xf32, #tpu.memory_space<any>>
      %136 = tpu.memref_squeeze %135 : memref<1x128xf32, #tpu.memory_space<any>> -> memref<128xf32, #tpu.memory_space<any>>
      %c0_i32_81 = arith.constant 0 : i32
      %137 = tpu.memref_slice %arg6[%c4_i32_78, %c0_i32_81] : memref<8x128xf32, #tpu.memory_space<vmem>> -> memref<1x128xf32, #tpu.memory_space<vmem>>
      %138 = tpu.memref_squeeze %137 : memref<1x128xf32, #tpu.memory_space<vmem>> -> memref<128xf32, #tpu.memory_space<vmem>>
      %139 = tpu.memref_slice %arg9[%c4_i32_79] : memref<8x!tpu.dma_semaphore, #tpu.memory_space<semaphore_mem>> -> memref<1x!tpu.dma_semaphore, #tpu.memory_space<semaphore_mem>>
      %140 = tpu.memref_squeeze %139 : memref<1x!tpu.dma_semaphore, #tpu.memory_space<semaphore_mem>> -> memref<!tpu.dma_semaphore, #tpu.memory_space<semaphore_mem>>
      tpu.wait_dma2 semaphore(%140 : memref<!tpu.dma_semaphore, #tpu.memory_space<semaphore_mem>>) src(%136 : memref<128xf32, #tpu.memory_space<any>>) dst(%138 : memref<128xf32, #tpu.memory_space<vmem>>)
      %c0_i32_82 = arith.constant 0 : i32
      %c5_i32_83 = arith.constant 5 : i32
      %c5_i32_84 = arith.constant 5 : i32
      %c0_i32_85 = arith.constant 0 : i32
      %141 = tpu.memref_slice %arg3[%c0_i32_82, %c0_i32_85] : memref<512x128xf32, #tpu.memory_space<any>> -> memref<1x128xf32, #tpu.memory_space<any>>
      %142 = tpu.memref_squeeze %141 : memref<1x128xf32, #tpu.memory_space<any>> -> memref<128xf32, #tpu.memory_space<any>>
      %c0_i32_86 = arith.constant 0 : i32
      %143 = tpu.memref_slice %arg6[%c5_i32_83, %c0_i32_86] : memref<8x128xf32, #tpu.memory_space<vmem>> -> memref<1x128xf32, #tpu.memory_space<vmem>>
      %144 = tpu.memref_squeeze %143 : memref<1x128xf32, #tpu.memory_space<vmem>> -> memref<128xf32, #tpu.memory_space<vmem>>
      %145 = tpu.memref_slice %arg9[%c5_i32_84] : memref<8x!tpu.dma_semaphore, #tpu.memory_space<semaphore_mem>> -> memref<1x!tpu.dma_semaphore, #tpu.memory_space<semaphore_mem>>
      %146 = tpu.memref_squeeze %145 : memref<1x!tpu.dma_semaphore, #tpu.memory_space<semaphore_mem>> -> memref<!tpu.dma_semaphore, #tpu.memory_space<semaphore_mem>>
      tpu.wait_dma2 semaphore(%146 : memref<!tpu.dma_semaphore, #tpu.memory_space<semaphore_mem>>) src(%142 : memref<128xf32, #tpu.memory_space<any>>) dst(%144 : memref<128xf32, #tpu.memory_space<vmem>>)
      %c0_i32_87 = arith.constant 0 : i32
      %c6_i32_88 = arith.constant 6 : i32
      %c6_i32_89 = arith.constant 6 : i32
      %c0_i32_90 = arith.constant 0 : i32
      %147 = tpu.memref_slice %arg3[%c0_i32_87, %c0_i32_90] : memref<512x128xf32, #tpu.memory_space<any>> -> memref<1x128xf32, #tpu.memory_space<any>>
      %148 = tpu.memref_squeeze %147 : memref<1x128xf32, #tpu.memory_space<any>> -> memref<128xf32, #tpu.memory_space<any>>
      %c0_i32_91 = arith.constant 0 : i32
      %149 = tpu.memref_slice %arg6[%c6_i32_88, %c0_i32_91] : memref<8x128xf32, #tpu.memory_space<vmem>> -> memref<1x128xf32, #tpu.memory_space<vmem>>
      %150 = tpu.memref_squeeze %149 : memref<1x128xf32, #tpu.memory_space<vmem>> -> memref<128xf32, #tpu.memory_space<vmem>>
      %151 = tpu.memref_slice %arg9[%c6_i32_89] : memref<8x!tpu.dma_semaphore, #tpu.memory_space<semaphore_mem>> -> memref<1x!tpu.dma_semaphore, #tpu.memory_space<semaphore_mem>>
      %152 = tpu.memref_squeeze %151 : memref<1x!tpu.dma_semaphore, #tpu.memory_space<semaphore_mem>> -> memref<!tpu.dma_semaphore, #tpu.memory_space<semaphore_mem>>
      tpu.wait_dma2 semaphore(%152 : memref<!tpu.dma_semaphore, #tpu.memory_space<semaphore_mem>>) src(%148 : memref<128xf32, #tpu.memory_space<any>>) dst(%150 : memref<128xf32, #tpu.memory_space<vmem>>)
      %c0_i32_92 = arith.constant 0 : i32
      %c7_i32_93 = arith.constant 7 : i32
      %c7_i32_94 = arith.constant 7 : i32
      %c0_i32_95 = arith.constant 0 : i32
      %153 = tpu.memref_slice %arg3[%c0_i32_92, %c0_i32_95] : memref<512x128xf32, #tpu.memory_space<any>> -> memref<1x128xf32, #tpu.memory_space<any>>
      %154 = tpu.memref_squeeze %153 : memref<1x128xf32, #tpu.memory_space<any>> -> memref<128xf32, #tpu.memory_space<any>>
      %c0_i32_96 = arith.constant 0 : i32
      %155 = tpu.memref_slice %arg6[%c7_i32_93, %c0_i32_96] : memref<8x128xf32, #tpu.memory_space<vmem>> -> memref<1x128xf32, #tpu.memory_space<vmem>>
      %156 = tpu.memref_squeeze %155 : memref<1x128xf32, #tpu.memory_space<vmem>> -> memref<128xf32, #tpu.memory_space<vmem>>
      %157 = tpu.memref_slice %arg9[%c7_i32_94] : memref<8x!tpu.dma_semaphore, #tpu.memory_space<semaphore_mem>> -> memref<1x!tpu.dma_semaphore, #tpu.memory_space<semaphore_mem>>
      %158 = tpu.memref_squeeze %157 : memref<1x!tpu.dma_semaphore, #tpu.memory_space<semaphore_mem>> -> memref<!tpu.dma_semaphore, #tpu.memory_space<semaphore_mem>>
      tpu.wait_dma2 semaphore(%158 : memref<!tpu.dma_semaphore, #tpu.memory_space<semaphore_mem>>) src(%154 : memref<128xf32, #tpu.memory_space<any>>) dst(%156 : memref<128xf32, #tpu.memory_space<vmem>>)
      %cst_97 = arith.constant 0xFF800000 : f32
      %159 = vector.broadcast %cst_97 : f32 to vector<8x1xf32>
      %c0_98 = arith.constant 0 : index
      %c0_99 = arith.constant 0 : index
      %160 = vector.load %arg7[%c0_98, %c0_99] : memref<8x1xf32, #tpu.memory_space<vmem>>, vector<8x1xf32>
      tpu.vector_store %arg7[%c0_98, %c0_99], %159 {strides = array<i32>} : memref<8x1xf32, #tpu.memory_space<vmem>>, vector<8x1xf32>,
      %cst_100 = arith.constant 0.000000e+00 : f32
      %161 = vector.broadcast %cst_100 : f32 to vector<8x1xf32>
      %c0_101 = arith.constant 0 : index
      %c0_102 = arith.constant 0 : index
      %162 = vector.load %arg8[%c0_101, %c0_102] : memref<8x1xf32, #tpu.memory_space<vmem>>, vector<8x1xf32>
      tpu.vector_store %arg8[%c0_101, %c0_102], %161 {strides = array<i32>} : memref<8x1xf32, #tpu.memory_space<vmem>>, vector<8x1xf32>,
    } else {
    }
    %c0 = arith.constant 0 : index
    %c0_1 = arith.constant 0 : index
    %3 = vector.load %arg6[%c0, %c0_1] : memref<8x128xf32, #tpu.memory_space<vmem>>, vector<8x128xf32>
    %4 = arith.truncf %3 : vector<8x128xf32> to vector<8x128xbf16>
    %c0_2 = arith.constant 0 : index
    %c0_3 = arith.constant 0 : index
    %5 = vector.load %arg4[%c0_2, %c0_3] : memref<128x128xf32, #tpu.memory_space<vmem>>, vector<128x128xf32>
    %6 = arith.truncf %5 : vector<128x128xf32> to vector<128x128xbf16>
    %cst = arith.constant dense<0.000000e+00> : vector<8x128xf32>
    %7 = tpu.matmul %4, %6, %cst {dimension_numbers = #tpu.dot_dimension_numbers<[1], [1], [0], [0], [0, 0, 1, 0], [], []>} : vector<8x128xbf16>, vector<128x128xbf16>, vector<8x128xf32> -> vector<8x128xf32>
    %c128_i32 = arith.constant 128 : i32
    %8 = arith.muli %arg1, %c128_i32 : i32
    %9 = tpu.assume_multiple %8, 128 : i32
    %c0_4 = arith.constant 0 : index
    %10 = arith.index_cast %9 : i32 to index
    %11 = vector.load %arg5[%c0_4, %10] : memref<8x512xf32, #tpu.memory_space<vmem>>, vector<8x128xf32>
    tpu.vector_store %arg5[%c0_4, %10], %7 {strides = array<i32>} : memref<8x512xf32, #tpu.memory_space<vmem>>, vector<8x128xf32>,
    %c0_5 = arith.constant 0 : index
    %c0_6 = arith.constant 0 : index
    %12 = vector.load %arg7[%c0_5, %c0_6] : memref<8x1xf32, #tpu.memory_space<vmem>>, vector<8x1xf32>
    %cst_7 = arith.constant dense<0xFF800000> : vector<8xf32>
    %13 = vector.multi_reduction <maximumf>, %7, %cst_7 [1] : vector<8x128xf32> to vector<8xf32>
    %14 = vector.shape_cast %13 : vector<8xf32> to vector<8x1xf32>
    %15 = arith.maximumf %12, %14 : vector<8x1xf32>
    %c0_8 = arith.constant 0 : index
    %c0_9 = arith.constant 0 : index
    %16 = vector.load %arg8[%c0_8, %c0_9] : memref<8x1xf32, #tpu.memory_space<vmem>>, vector<8x1xf32>
    %17 = arith.subf %12, %15 : vector<8x1xf32>
    %18 = math.exp %17 : vector<8x1xf32>
    %19 = arith.mulf %16, %18 : vector<8x1xf32>
    %20 = vector.broadcast %15 : vector<8x1xf32> to vector<8x128xf32>
    %21 = arith.subf %7, %20 : vector<8x128xf32>
    %22 = math.exp %21 : vector<8x128xf32>
    %cst_10 = arith.constant dense<0.000000e+00> : vector<8xf32>
    %23 = vector.multi_reduction <add>, %22, %cst_10 [1] : vector<8x128xf32> to vector<8xf32>
    %24 = vector.shape_cast %23 : vector<8xf32> to vector<8x1xf32>
    %25 = arith.addf %19, %24 : vector<8x1xf32>
    %c0_11 = arith.constant 0 : index
    %c0_12 = arith.constant 0 : index
    %26 = vector.load %arg8[%c0_11, %c0_12] : memref<8x1xf32, #tpu.memory_space<vmem>>, vector<8x1xf32>
    tpu.vector_store %arg8[%c0_11, %c0_12], %25 {strides = array<i32>} : memref<8x1xf32, #tpu.memory_space<vmem>>, vector<8x1xf32>,
    %c0_13 = arith.constant 0 : index
    %c0_14 = arith.constant 0 : index
    %27 = vector.load %arg7[%c0_13, %c0_14] : memref<8x1xf32, #tpu.memory_space<vmem>>, vector<8x1xf32>
    tpu.vector_store %arg7[%c0_13, %c0_14], %15 {strides = array<i32>} : memref<8x1xf32, #tpu.memory_space<vmem>>, vector<8x1xf32>,
    %c3_i32 = arith.constant 3 : i32
    %28 = arith.cmpi eq, %arg1, %c3_i32 : i32
    %29 = arith.extui %28 : i1 to i32
    %c0_i32_15 = arith.constant 0 : i32
    %30 = arith.cmpi ne, %29, %c0_i32_15 : i32
    scf.if %30 {
      %c0_16 = arith.constant 0 : index
      %c0_17 = arith.constant 0 : index
      %31 = vector.load %arg7[%c0_16, %c0_17] : memref<8x1xf32, #tpu.memory_space<vmem>>, vector<8x1xf32>
      %c0_18 = arith.constant 0 : index
      %c0_19 = arith.constant 0 : index
      %32 = vector.load %arg8[%c0_18, %c0_19] : memref<8x1xf32, #tpu.memory_space<vmem>>, vector<8x1xf32>
      %33 = math.log %32 : vector<8x1xf32>
      %34 = arith.addf %31, %33 : vector<8x1xf32>
      %c0_20 = arith.constant 0 : index
      %c0_21 = arith.constant 0 : index
      %35 = vector.load %arg5[%c0_20, %c0_21] : memref<8x512xf32, #tpu.memory_space<vmem>>, vector<8x512xf32>
      %36 = vector.broadcast %34 : vector<8x1xf32> to vector<8x512xf32>
      %37 = arith.subf %35, %36 : vector<8x512xf32>
      %c0_22 = arith.constant 0 : index
      %c0_23 = arith.constant 0 : index
      %38 = vector.load %arg5[%c0_22, %c0_23] : memref<8x512xf32, #tpu.memory_space<vmem>>, vector<8x512xf32>
      tpu.vector_store %arg5[%c0_22, %c0_23], %37 {strides = array<i32>} : memref<8x512xf32, #tpu.memory_space<vmem>>, vector<8x512xf32>,
    } else {
    }
    return
  }
  func.func @transform_1(%arg0: i32, %arg1: i32, %arg2: memref<16xi32, #tpu.memory_space<smem>>) -> (i32, i32) {
    %c0_i32 = arith.constant 0 : i32
    %c0_i32_0 = arith.constant 0 : i32
    return %arg1, %c0_i32 : i32, i32
  }
  func.func @transform_2(%arg0: i32, %arg1: i32, %arg2: memref<16xi32, #tpu.memory_space<smem>>) -> (i32, i32) {
    %c0_i32 = arith.constant 0 : i32
    %c0_i32_0 = arith.constant 0 : i32
    return %arg0, %c0_i32 : i32, i32
  }
}

</mosaic_0001>

<llo_original>
// kernel: tpu_custom_call.1
$region0: #{tpu_custom_call.1}
  #allocation0 [shape = 'u32[]', space=smem, size = 0x4, offset = 0x4, fixed_abs, tag = 'smem constant byte address 0x4 - core index']
  #allocation1 [shape = 'u32[144,128]{1,0:T(1,128)}', space=vmem, size = 0x12000, scoped, tag = 'internal scratch']
  #allocation2 [shape = 'f32[8,128]{1,0:T(8,128)}', space=vmem, size = 0x1000, scoped, tag = 'scratch operand']
  #allocation3 [shape = 'f32[8,1]{1,0:T(8,128)}', space=vmem, size = 0x1000, scoped, tag = 'scratch operand']
  #allocation4 [shape = 'f32[8,1]{1,0:T(8,128)}', space=vmem, size = 0x1000, scoped, tag = 'scratch operand']
  #allocation5 [shape = 's32[8]{0}', space=sflag, size = 0x20, scoped, tag = 'scratch operand']
  #allocation6 [shape = 's32[1]{0}', space=sflag, size = 0x4, scoped, tag = 'scoped memory for tpu_custom_call.1']
  #allocation7 [shape = 'u8[512]{0}', space=smem, size = 0x200, scoped, tag = 'prefetched SMEM operand 0']
  #allocation12 [shape = 's32[]', space=sflag, size = 0x4, offset = 0, fixed_abs, tag = 'sflag constant byte address 0x0 - dummy sync flag']
  #allocation13 [shape = 's32[]', space=sflag, size = 0x4, offset = 0, fixed_abs, tag = 'sflag constant byte address 0x0 - dummy sync flag']
  #allocation14 [shape = 'u32[]', space=smem, size = 0x4, offset = 0x44, fixed_abs, tag = 'smem constant byte address 0x44 - assertion arg 0']
  #allocation15 [shape = 'u32[]', space=smem, size = 0x4, offset = 0x48, fixed_abs, tag = 'smem constant byte address 0x48 - assertion arg 1']
  #allocation16 [shape = 's32[]', space=sflag, size = 0x4, offset = 0, fixed_abs, tag = 'sflag constant byte address 0x0 - dummy sync flag']
  #allocation17 [shape = 's32[]', space=sflag, size = 0x4, offset = 0, fixed_abs, tag = 'sflag constant byte address 0x0 - dummy sync flag']
  #allocation18 [shape = 's32[]', space=sflag, size = 0x4, offset = 0, fixed_abs, tag = 'sflag constant byte address 0x0 - dummy sync flag']
  #allocation19 [shape = 's32[]', space=sflag, size = 0x4, offset = 0, fixed_abs, tag = 'sflag constant byte address 0x0 - dummy sync flag']
  #allocation20 [shape = 's32[]', space=sflag, size = 0x4, offset = 0, fixed_abs, tag = 'sflag constant byte address 0x0 - dummy sync flag']
  #allocation21 [shape = 's32[]', space=sflag, size = 0x4, offset = 0, fixed_abs, tag = 'sflag constant byte address 0x0 - dummy sync flag']
  #allocation22 [shape = 's32[]', space=sflag, size = 0x4, offset = 0, fixed_abs, tag = 'sflag constant byte address 0x0 - dummy sync flag']
  #allocation23 [shape = 's32[]', space=sflag, size = 0x4, offset = 0, fixed_abs, tag = 'sflag constant byte address 0x0 - dummy sync flag']
  #allocation24 [shape = 's32[]', space=sflag, size = 0x4, offset = 0, fixed_abs, tag = 'sflag constant byte address 0x0 - dummy sync flag']
  #allocation25 [shape = 's32[]', space=sflag, size = 0x4, offset = 0, fixed_abs, tag = 'sflag constant byte address 0x0 - dummy sync flag']
  #allocation26 [shape = 's32[]', space=sflag, size = 0x4, offset = 0, fixed_abs, tag = 'sflag constant byte address 0x0 - dummy sync flag']
  #allocation27 [shape = 's32[]', space=sflag, size = 0x4, offset = 0, fixed_abs, tag = 'sflag constant byte address 0x0 - dummy sync flag']
  #allocation28 [shape = 's32[]', space=sflag, size = 0x4, offset = 0, fixed_abs, tag = 'sflag constant byte address 0x0 - dummy sync flag']
  #allocation29 [shape = 's32[]', space=sflag, size = 0x4, offset = 0, fixed_abs, tag = 'sflag constant byte address 0x0 - dummy sync flag']
  %s0 = inlined_call_operand.hbm [shape: s32[16], index: 0, kind: input, shape index: {}]
  %s1 = inlined_call_operand.hbm [shape: f32[512,128], index: 1, kind: input, shape index: {}]
  %s2 = inlined_call_operand.hbm [shape: f32[512,128], index: 2, kind: input, shape index: {}]
  %s3 = inlined_call_operand.hbm [shape: f32[16,512], index: 3, kind: output, shape index: {}]
  %s4 = sld [smem:[#allocation0]]
  $region81: #{tpu_custom_call.1} parent=0
    _
  %s6 = ssub.s32 1, %s4
  %s7 = scalar_select 0, %s6, %s4
  %9 = dma.hbm_to_smem %s0, 16, [#allocation7], [#allocation6]
  %10 = dma.done [#allocation6], 16
  %11 = sfence
  $region1: #{tpu_custom_call.1} parent=0
    #allocation8 [shape = 'u8[131072]{0}', space=vmem, size = 0x20000, scoped, tag = 'input window, operand 2']
    #allocation9 [shape = 's32[2]{0}', space=sflag, size = 0x8, scoped, tag = 'scoped memory for tpu_custom_call.1']
    #allocation10 [shape = 's32[2]{0}', space=sflag, size = 0x8, scoped, tag = 'scoped memory for tpu_custom_call.1']
    #allocation11 [shape = 'u8[32768]{0}', space=vmem, size = 0x8000, scoped, tag = 'output window, operand 0']
    %12 = vsyncpa [#allocation9], 0
    %s13 = scalar_lea.sflag [#allocation9], 1
    %14 = vsyncpa %s13, 0
    %15 = vsyncpa [#allocation10], 0
    %s16 = scalar_lea.sflag [#allocation10], 1
    %17 = vsyncpa %s16, 0
    loop: start=0, step=1, limit=10
    $region2: #{tpu_custom_call.1} parent=1 // loop_pre_header
      _
    $region3: #{tpu_custom_call.1} parent=1 // loop_header
      %s19 = sphi 0, %s23
      %p20 = scmp.ge.s32.totalorder %s19, 10
      %s26 = sphi 0, %s38
      %s27 = sphi 0, %s34
      %s28 = sphi 0, %s26
      %s29 = sphi 0, %s27
      %s30 = sphi 0, %s28
      %s31 = sphi 0, %s29
      %s41 = sphi 0, %s43
      %s44 = sphi 0, %s41
      %s45 = sphi 0, %s44
      %s61 = sphi 0, %s45
      %s67 = sphi 0, %s69
      %s70 = sphi 0, %s67
      %s71 = sphi 0, %s70
      %s87 = sphi 0, %s71
    $region4: #{tpu_custom_call.1} parent=1 // loop_header_branch
      %22 = sbr.rel (%p20) target = $region8
    $region5: #{tpu_custom_call.1} parent=1 // loop_body
      %s24 = ssub.s32 %s19, 1
      %s25 = ssub.s32 %s19, 2
      %s32 = sadd.s32 1, %s27
      %p33 = scmp.ge.s32.totalorder %s32, 4
      %s34 = scalar_select %p33, 0, %s32
      %s35 = sadd.s32 1, %s26
      %s36 = scalar_select %p33, %s35, %s26
      %p37 = scmp.ge.s32.totalorder %s36, 2
      %s38 = scalar_select %p37, 0, %s36
      %s39 = ssub.s32 %s27, %s34
      %p40 = scmp.eq.s32.totalorder %s39, 0
      %s42 = sadd.s32 %s41, 1
      %s43 = scalar_select %p40, %s41, %s42
      %p46 = pneg %p40
      %p47 = scmp.eq.s32.totalorder %s19, 7
      %p48 = por %p46, %p47
      %p49 = scmp.ne.s32.totalorder %s41, %s44
      %p50 = scmp.eq.s32.totalorder %s19, 0
      %p51 = por %p49, %p50
      %p52 = scmp.ne.s32.totalorder %s41, %s44
      %p53 = scmp.eq.s32.totalorder %s24, 7
      %p54 = por %p52, %p53
      %p55 = scmp.ne.s32.totalorder %s44, %s45
      %p56 = scmp.eq.s32.totalorder %s24, 0
      %p57 = por %p55, %p56
      %p58 = scmp.ne.s32.totalorder %s44, %s45
      %p59 = scmp.eq.s32.totalorder %s25, 7
      %p60 = por %p58, %p59
      %p62 = scmp.ne.s32.totalorder %s45, %s61
      %p63 = scmp.eq.s32.totalorder %s25, 0
      %p64 = por %p62, %p63
      %s65 = ssub.s32 %s26, %s38
      %p66 = scmp.eq.s32.totalorder %s65, 0
      %s68 = sadd.s32 %s67, 1
      %s69 = scalar_select %p66, %s67, %s68
      %p72 = pneg %p66
      %p73 = scmp.eq.s32.totalorder %s19, 7
      %p74 = por %p72, %p73
      %p75 = scmp.ne.s32.totalorder %s67, %s70
      %p76 = scmp.eq.s32.totalorder %s19, 0
      %p77 = por %p75, %p76
      %p78 = scmp.ne.s32.totalorder %s67, %s70
      %p79 = scmp.eq.s32.totalorder %s24, 7
      %p80 = por %p78, %p79
      %p81 = scmp.ne.s32.totalorder %s70, %s71
      %p82 = scmp.eq.s32.totalorder %s24, 0
      %p83 = por %p81, %p82
      %p84 = scmp.ne.s32.totalorder %s70, %s71
      %p85 = scmp.eq.s32.totalorder %s25, 7
      %p86 = por %p84, %p85
      %p88 = scmp.ne.s32.totalorder %s71, %s87
      %p89 = scmp.eq.s32.totalorder %s25, 0
      %p90 = por %p88, %p89
      %p91 = scmp.le.s32.totalorder 1, %s19
      %p92 = scmp.lt.s32.totalorder %s19, 9
      %p93 = pnand %p91, %p92
      %p94 = pneg %p93
      // Predicated region
      $region9: #{tpu_custom_call.1} parent=5 // pred_check
        _
      $region10: #{tpu_custom_call.1} parent=5 // pred_check_branch
        %96 = sbr.rel (%p93) target = $region12
      $region11: #{tpu_custom_call.1} parent=5 // pred_region
        %s97 = ssub.s32 %s19, 1
      $region12: #{tpu_custom_call.1} parent=5 // pred_fallthru
        _
      %p98 = scmp.lt.s32.totalorder %s19, 8
      // Predicated region
      $region13: #{tpu_custom_call.1} parent=5 // pred_check
        %p99 = pneg %p98
      $region14: #{tpu_custom_call.1} parent=5 // pred_check_branch
        %101 = sbr.rel (%p99) target = $region16
      $region15: #{tpu_custom_call.1} parent=5 // pred_region
        // Predicated region
        $region17: #{tpu_custom_call.1} parent=15 // pred_check
          %p102 = pneg %p51
        $region18: #{tpu_custom_call.1} parent=15 // pred_check_branch
          %104 = sbr.rel (%p102) target = $region20
        $region19: #{tpu_custom_call.1} parent=15 // pred_region
          %s105 = sand.u32 %s41, 1
          %s106 = scalar_lea.sflag [#allocation9], %s105
          %s107 = sand.u32 %s41, 1
          %s108 = smul.addr %s107, 128
          %s109 = scalar_lea.vmem [#allocation8], %s108
          %s110 = smul.u32 16, %s27
          %s112 = ssub.s32 2048, 2048
          %113 = vsyncadd %s106, %s112
          %s114 = smul.addr %s110, 128
          %s115 = scalar_lea.hbm %s2, %s114
          %s116 = sshll.u32 %s109, 4
          %s117 = int_to_ptr.vmem [resolvable:$true] %s116
          %122 = dma.hbm_to_vmem [thread:$0]  %s115, 2048, %s117, %s106, 128, 128, 8
        $region20: #{tpu_custom_call.1} parent=15 // pred_fallthru
          _
      $region16: #{tpu_custom_call.1} parent=5 // pred_fallthru
        _
      %p123 = scmp.le.s32.totalorder 1, %s19
      %p124 = scmp.lt.s32.totalorder %s19, 9
      %p125 = pnand %p123, %p124
      %p126 = pneg %p125
      // Predicated region
      $region21: #{tpu_custom_call.1} parent=5 // pred_check
        _
      $region22: #{tpu_custom_call.1} parent=5 // pred_check_branch
        %128 = sbr.rel (%p125) target = $region24
      $region23: #{tpu_custom_call.1} parent=5 // pred_region
        %s129 = ssub.s32 %s19, 1
        %s130 = sand.u32 %s44, 1
        %s131 = scalar_lea.sflag [#allocation9], %s130
        %s132 = sand.u32 %s44, 1
        %s133 = smul.addr %s132, 128
        %s134 = scalar_lea.vmem [#allocation8], %s133
        // Predicated region
        $region25: #{tpu_custom_call.1} parent=23 // pred_check
          %p135 = pneg %p57
        $region26: #{tpu_custom_call.1} parent=23 // pred_check_branch
          %137 = sbr.rel (%p135) target = $region28
        $region27: #{tpu_custom_call.1} parent=23 // pred_region
          %138 = dma.done %s131, 2048
        $region28: #{tpu_custom_call.1} parent=23 // pred_fallthru
          _
        %s139 = sand.u32 %s44, 1
        %s140 = scalar_lea.sflag [#allocation9], %s139
        %s141 = sand.u32 %s44, 1
        %s142 = smul.addr %s141, 128
        %s143 = scalar_lea.vmem [#allocation8], %s142
        %p144 = pneg %p57
        %p145 = pneg %p54
        %p146 = pneg %p83
        %p147 = pneg %p80
        %s148 = sand.u32 %s70, 1
        %s149 = scalar_lea.sflag [#allocation10], %s148
        %s150 = sand.u32 %s70, 1
        %s151 = smul.addr %s150, 32
        %s152 = scalar_lea.vmem [#allocation11], %s151
        %s153 = smul.u32 16, %s29
        %p155 = scmp.eq.s32.totalorder %s29, 0
        // Predicated region
        $region29: #{tpu_custom_call.1} parent=23 // pred_check
          %p156 = pneg %p155
        $region30: #{tpu_custom_call.1} parent=23 // pred_check_branch
          %158 = sbr.rel (%p156) target = $region32
        $region31: #{tpu_custom_call.1} parent=23 // pred_region
          %s159 = smul.u32 %s28, 8
          %s160 = sld [smem:[#allocation7 + %s159]]
          %s161 = smul.addr %s160, 16
          %s162 = scalar_lea.hbm %s1, %s161
          // Predicated region
          $region33: #{tpu_custom_call.1} parent=31 // pred_check
            _
          $region34: #{tpu_custom_call.1} parent=31 // pred_check_branch
            %164 = sbr.rel target = $region36
          $region35: #{tpu_custom_call.1} parent=31 // pred_region
            %165 = sst [smem:[#allocation14]] [#allocation13]
            %166 = sst [smem:[#allocation15]] [#allocation12]
          $region36: #{tpu_custom_call.1} parent=31 // pred_fallthru
            _
          %168 = shalt.err (0)
          %s170 = sshll.u32 [#allocation2], 4
          %s171 = int_to_ptr.vmem [resolvable:$true] %s170
          %173 = dma.hbm_to_vmem [thread:$0]  %s162, 16, %s171, [#allocation5]
          %s174 = sadd.s32 %s159, 1
          %s175 = sld [smem:[#allocation7 + %s174]]
          %s176 = smul.addr %s175, 16
          %s177 = scalar_lea.hbm %s1, %s176
          %s178 = scalar_lea.vmem [#allocation2], 1
          %s179 = scalar_lea.sflag [#allocation5], 1
          // Predicated region
          $region37: #{tpu_custom_call.1} parent=31 // pred_check
            _
          $region38: #{tpu_custom_call.1} parent=31 // pred_check_branch
            %181 = sbr.rel target = $region40
          $region39: #{tpu_custom_call.1} parent=31 // pred_region
            %182 = sst [smem:[#allocation14]] [#allocation17]
            %183 = sst [smem:[#allocation15]] [#allocation16]
          $region40: #{tpu_custom_call.1} parent=31 // pred_fallthru
            _
          %185 = shalt.err (0)
          %s187 = sshll.u32 %s178, 4
          %s188 = int_to_ptr.vmem [resolvable:$true] %s187
          %190 = dma.hbm_to_vmem [thread:$0]  %s177, 16, %s188, %s179
          %s191 = sadd.s32 %s159, 2
          %s192 = sld [smem:[#allocation7 + %s191]]
          %s193 = smul.addr %s192, 16
          %s194 = scalar_lea.hbm %s1, %s193
          %s195 = scalar_lea.vmem [#allocation2], 2
          %s196 = scalar_lea.sflag [#allocation5], 2
          // Predicated region
          $region41: #{tpu_custom_call.1} parent=31 // pred_check
            _
          $region42: #{tpu_custom_call.1} parent=31 // pred_check_branch
            %198 = sbr.rel target = $region44
          $region43: #{tpu_custom_call.1} parent=31 // pred_region
            %199 = sst [smem:[#allocation14]] [#allocation19]
            %200 = sst [smem:[#allocation15]] [#allocation18]
          $region44: #{tpu_custom_call.1} parent=31 // pred_fallthru
            _
          %202 = shalt.err (0)
          %s204 = sshll.u32 %s195, 4
          %s205 = int_to_ptr.vmem [resolvable:$true] %s204
          %207 = dma.hbm_to_vmem [thread:$0]  %s194, 16, %s205, %s196
          %s208 = sadd.s32 %s159, 3
          %s209 = sld [smem:[#allocation7 + %s208]]
          %s210 = smul.addr %s209, 16
          %s211 = scalar_lea.hbm %s1, %s210
          %s212 = scalar_lea.vmem [#allocation2], 3
          %s213 = scalar_lea.sflag [#allocation5], 3
          // Predicated region
          $region45: #{tpu_custom_call.1} parent=31 // pred_check
            _
          $region46: #{tpu_custom_call.1} parent=31 // pred_check_branch
            %215 = sbr.rel target = $region48
          $region47: #{tpu_custom_call.1} parent=31 // pred_region
            %216 = sst [smem:[#allocation14]] [#allocation21]
            %217 = sst [smem:[#allocation15]] [#allocation20]
          $region48: #{tpu_custom_call.1} parent=31 // pred_fallthru
            _
          %219 = shalt.err (0)
          %s221 = sshll.u32 %s212, 4
          %s222 = int_to_ptr.vmem [resolvable:$true] %s221
          %224 = dma.hbm_to_vmem [thread:$0]  %s211, 16, %s222, %s213
          %s225 = sadd.s32 %s159, 4
          %s226 = sld [smem:[#allocation7 + %s225]]
          %s227 = smul.addr %s226, 16
          %s228 = scalar_lea.hbm %s1, %s227
          %s229 = scalar_lea.vmem [#allocation2], 4
          %s230 = scalar_lea.sflag [#allocation5], 4
          // Predicated region
          $region49: #{tpu_custom_call.1} parent=31 // pred_check
            _
          $region50: #{tpu_custom_call.1} parent=31 // pred_check_branch
            %232 = sbr.rel target = $region52
          $region51: #{tpu_custom_call.1} parent=31 // pred_region
            %233 = sst [smem:[#allocation14]] [#allocation23]
            %234 = sst [smem:[#allocation15]] [#allocation22]
          $region52: #{tpu_custom_call.1} parent=31 // pred_fallthru
            _
          %236 = shalt.err (0)
          %s238 = sshll.u32 %s229, 4
          %s239 = int_to_ptr.vmem [resolvable:$true] %s238
          %241 = dma.hbm_to_vmem [thread:$0]  %s228, 16, %s239, %s230
          %s242 = sadd.s32 %s159, 5
          %s243 = sld [smem:[#allocation7 + %s242]]
          %s244 = smul.addr %s243, 16
          %s245 = scalar_lea.hbm %s1, %s244
          %s246 = scalar_lea.vmem [#allocation2], 5
          %s247 = scalar_lea.sflag [#allocation5], 5
          // Predicated region
          $region53: #{tpu_custom_call.1} parent=31 // pred_check
            _
          $region54: #{tpu_custom_call.1} parent=31 // pred_check_branch
            %249 = sbr.rel target = $region56
          $region55: #{tpu_custom_call.1} parent=31 // pred_region
            %250 = sst [smem:[#allocation14]] [#allocation25]
            %251 = sst [smem:[#allocation15]] [#allocation24]
          $region56: #{tpu_custom_call.1} parent=31 // pred_fallthru
            _
          %253 = shalt.err (0)
          %s255 = sshll.u32 %s246, 4
          %s256 = int_to_ptr.vmem [resolvable:$true] %s255
          %258 = dma.hbm_to_vmem [thread:$0]  %s245, 16, %s256, %s247
          %s259 = sadd.s32 %s159, 6
          %s260 = sld [smem:[#allocation7 + %s259]]
          %s261 = smul.addr %s260, 16
          %s262 = scalar_lea.hbm %s1, %s261
          %s263 = scalar_lea.vmem [#allocation2], 6
          %s264 = scalar_lea.sflag [#allocation5], 6
          // Predicated region
          $region57: #{tpu_custom_call.1} parent=31 // pred_check
            _
          $region58: #{tpu_custom_call.1} parent=31 // pred_check_branch
            %266 = sbr.rel target = $region60
          $region59: #{tpu_custom_call.1} parent=31 // pred_region
            %267 = sst [smem:[#allocation14]] [#allocation27]
            %268 = sst [smem:[#allocation15]] [#allocation26]
          $region60: #{tpu_custom_call.1} parent=31 // pred_fallthru
            _
          %270 = shalt.err (0)
          %s272 = sshll.u32 %s263, 4
          %s273 = int_to_ptr.vmem [resolvable:$true] %s272
          %275 = dma.hbm_to_vmem [thread:$0]  %s262, 16, %s273, %s264
          %s276 = sadd.s32 %s159, 7
          %s277 = sld [smem:[#allocation7 + %s276]]
          %s278 = smul.addr %s277, 16
          %s279 = scalar_lea.hbm %s1, %s278
          %s280 = scalar_lea.vmem [#allocation2], 7
          %s281 = scalar_lea.sflag [#allocation5], 7
          // Predicated region
          $region61: #{tpu_custom_call.1} parent=31 // pred_check
            _
          $region62: #{tpu_custom_call.1} parent=31 // pred_check_branch
            %283 = sbr.rel target = $region64
          $region63: #{tpu_custom_call.1} parent=31 // pred_region
            %284 = sst [smem:[#allocation14]] [#allocation29]
            %285 = sst [smem:[#allocation15]] [#allocation28]
          $region64: #{tpu_custom_call.1} parent=31 // pred_fallthru
            _
          %287 = shalt.err (0)
          %s289 = sshll.u32 %s280, 4
          %s290 = int_to_ptr.vmem [resolvable:$true] %s289
          %292 = dma.hbm_to_vmem [thread:$0]  %s279, 16, %s290, %s281
          %294 = dma.done [#allocation5], 16
          %296 = dma.done %s179, 16
          %298 = dma.done %s196, 16
          %300 = dma.done %s213, 16
          %302 = dma.done %s230, 16
          %304 = dma.done %s247, 16
          %306 = dma.done %s264, 16
          %308 = dma.done %s281, 16
          %vm309 = vcmask 7168
          %310 = vst.msk [vmem:[#allocation3] sm:$0xff] %vm309, -inf
          %311 = vst.msk [vmem:[#allocation4] sm:$0xff] %vm309, 0.0
        $region32: #{tpu_custom_call.1} parent=23 // pred_fallthru
          _
        %v312 = vld [vmem:[#allocation2] sm:$0xff]
        %v313 = vpack.c.bf16 %v312, %v312
        %v314 = vld [vmem:[%s134] sm:$0xff]
        %v315 = vld [vmem:[%s134 + $0x8] sm:$0xff]
        %v316 = vld [vmem:[%s134 + $0x10] sm:$0xff]
        %v317 = vld [vmem:[%s134 + $0x18] sm:$0xff]
        %v318 = vld [vmem:[%s134 + $0x20] sm:$0xff]
        %v319 = vld [vmem:[%s134 + $0x28] sm:$0xff]
        %v320 = vld [vmem:[%s134 + $0x30] sm:$0xff]
        %v321 = vld [vmem:[%s134 + $0x38] sm:$0xff]
        %v322 = vld [vmem:[%s134 + $0x40] sm:$0xff]
        %v323 = vld [vmem:[%s134 + $0x48] sm:$0xff]
        %v324 = vld [vmem:[%s134 + $0x50] sm:$0xff]
        %v325 = vld [vmem:[%s134 + $0x58] sm:$0xff]
        %v326 = vld [vmem:[%s134 + $0x60] sm:$0xff]
        %v327 = vld [vmem:[%s134 + $0x68] sm:$0xff]
        %v328 = vld [vmem:[%s134 + $0x70] sm:$0xff]
        %v329 = vld [vmem:[%s134 + $0x78] sm:$0xff]
        %v330 = vpack.c.bf16 %v315, %v314
        %v331 = vpack.c.bf16 %v317, %v316
        %v332 = vpack.c.bf16 %v319, %v318
        %v333 = vpack.c.bf16 %v321, %v320
        %v334 = vpack.c.bf16 %v323, %v322
        %v335 = vpack.c.bf16 %v325, %v324
        %v336 = vpack.c.bf16 %v327, %v326
        %v337 = vpack.c.bf16 %v329, %v328
        %338 = vmatprep.subr.bf16.mxu0 0
        %339 = vmatpush1.bf16.xpose.msra.mxu0 %v330
        %340 = vmatprep.subr.bf16.mxu0 0
        %341 = vmatpush1.bf16.xpose.msra.mxu0 %v331
        %342 = vmatprep.subr.bf16.mxu0 0
        %343 = vmatpush1.bf16.xpose.msra.mxu0 %v332
        %344 = vmatprep.subr.bf16.mxu0 0
        %345 = vmatpush1.bf16.xpose.msra.mxu0 %v333
        %346 = vmatprep.subr.bf16.mxu0 0
        %347 = vmatpush1.bf16.xpose.msra.mxu0 %v334
        %348 = vmatprep.subr.bf16.mxu0 0
        %349 = vmatpush1.bf16.xpose.msra.mxu0 %v335
        %350 = vmatprep.subr.bf16.mxu0 0
        %351 = vmatpush1.bf16.xpose.msra.mxu0 %v336
        %352 = vmatprep.subr.bf16.mxu0 0
        %353 = vmatpush1.bf16.xpose.msra.mxu0 %v337
        %354 = vmatprep.subr.bf16.mxu0 0
        %355 = vmatpush1.bf16.xpose.msra.mxu0 0
        %356 = vmatprep.subr.bf16.mxu0 0
        %357 = vmatpush1.bf16.xpose.msra.mxu0 0
        %358 = vmatprep.subr.bf16.mxu0 0
        %359 = vmatpush1.bf16.xpose.msra.mxu0 0
        %360 = vmatprep.subr.bf16.mxu0 0
        %361 = vmatpush1.bf16.xpose.msra.mxu0 0
        %362 = vmatprep.subr.bf16.mxu0 0
        %363 = vmatpush1.bf16.xpose.msra.mxu0 0
        %364 = vmatprep.subr.bf16.mxu0 0
        %365 = vmatpush1.bf16.xpose.msra.mxu0 0
        %366 = vmatprep.subr.bf16.mxu0 0
        %367 = vmatpush1.bf16.xpose.msra.mxu0 0
        %368 = vmatprep.subr.bf16.mxu0 0
        %369 = vmatpush1.bf16.xpose.msra.mxu0 0
        %370 = vmatprep.mubr.bf16.mxu0 0
        %371 = vmatmul.mubr.bf16.gmra.mrb[0].mxu0 %v313
        %v372 = vpop.f32.mrb[0].mxu0
        %v373 = vadd.f32 0.0, %v372
        %v374 = vpop.f32.mrb[0].mxu0
        %v375 = vpop.f32.mrb[0].mxu0
        %v376 = vpop.f32.mrb[0].mxu0
        %377 = vdwg.mxu0
        %s378 = smul.u32 %s29, 128
        %s379 = sshra.s32 %s378, 7
        %s380 = sand.u32 %s378, 127
        %s381 = smul.addr %s379, 8
        %s382 = scalar_lea.vmem %s152, %s381 [#allocation11]
        %383 = vst [vmem:[%s382] sm:$0xff] %v373
        %v384 = vld [vmem:[#allocation3] sm:$0xff]
        %385 = vmax.xlane.f32.xlu0 %v373
        %v386 = vpop.xlane.xlu0 %385
        %v387 = vmax.f32 %v384, %v386
        %v388 = vld [vmem:[#allocation4] sm:$0xff]
        %v389 = vsub.f32 %v384, %v387
        %v390 = vmul.f32 %v389, 1.442695
        %v391 = vpow.pop %v390
        %v392 = vmul.f32 %v388, %v391
        %394 = vset.pattern.permute.xlu0 0
        %395 = vperm.xlu0 %394, %v387
        %v396 = vpop.permute.xlu0 %395
        %v398 = vsub.f32 %v373, %v396
        %v399 = vmul.f32 %v398, 1.442695
        %v400 = vpow.pop %v399
        %401 = vadd.xlane.f32.xlu0 %v400
        %v402 = vpop.xlane.xlu0 %401
        %v403 = vadd.f32 %v392, %v402
        %vm404 = vcmask 7168
        %405 = vst.msk [vmem:[#allocation4] sm:$0xff] %vm404, %v403
        %406 = vst.msk [vmem:[#allocation3] sm:$0xff] %vm404, %v387
        %p407 = scmp.eq.s32.totalorder %s29, 3
        // Predicated region
        $region65: #{tpu_custom_call.1} parent=23 // pred_check
          %p408 = pneg %p407
        $region66: #{tpu_custom_call.1} parent=23 // pred_check_branch
          %410 = sbr.rel (%p408) target = $region68
        $region67: #{tpu_custom_call.1} parent=23 // pred_region
          %v411 = vld [vmem:[#allocation3] sm:$0xff]
          %v412 = vld [vmem:[#allocation4] sm:$0xff]
          %v413 = vlog2.pop %v412
          %v414 = vmul.f32 %v413, 0.6931472
          %v415 = vadd.f32 %v411, %v414
          %v416 = vld [vmem:[%s152] sm:$0xff]
          %v417 = vld [vmem:[%s152 + $0x8] sm:$0xff]
          %v418 = vld [vmem:[%s152 + $0x10] sm:$0xff]
          %v419 = vld [vmem:[%s152 + $0x18] sm:$0xff]
          %421 = vset.pattern.permute.xlu0 0
          %422 = vperm.xlu0 %421, %v415
          %v423 = vpop.permute.xlu0 %422
          %v425 = vsub.f32 %v416, %v423
          %v426 = vsub.f32 %v417, %v423
          %v427 = vsub.f32 %v418, %v423
          %v428 = vsub.f32 %v419, %v423
          %429 = vst [vmem:[%s152] sm:$0xff] %v425
          %430 = vst [vmem:[%s152 + $0x8] sm:$0xff] %v426
          %431 = vst [vmem:[%s152 + $0x10] sm:$0xff] %v427
          %432 = vst [vmem:[%s152 + $0x18] sm:$0xff] %v428
        $region68: #{tpu_custom_call.1} parent=23 // pred_fallthru
          _
        %s433 = sand.u32 %s70, 1
        %s434 = scalar_lea.sflag [#allocation10], %s433
        %s435 = sand.u32 %s70, 1
        %s436 = smul.addr %s435, 32
        %s437 = scalar_lea.vmem [#allocation11], %s436
        // Predicated region
        $region69: #{tpu_custom_call.1} parent=23 // pred_check
          %p438 = pneg %p80
        $region70: #{tpu_custom_call.1} parent=23 // pred_check_branch
          %440 = sbr.rel (%p438) target = $region72
        $region71: #{tpu_custom_call.1} parent=23 // pred_region
          %s442 = ssub.s32 512, 512
          %443 = vsyncadd %s434, %s442
          %s444 = smul.addr %s28, 4
          %s445 = smul.addr %s444, 128
          %s446 = scalar_lea.hbm %s3, %s445
          %s448 = sshll.u32 %s437, 4
          %s449 = int_to_ptr.vmem [resolvable:$true] %s448
          %451 = dma.vmem_to_hbm [thread:$0]  %s449, 512, %s446, %s434
        $region72: #{tpu_custom_call.1} parent=23 // pred_fallthru
          _
      $region24: #{tpu_custom_call.1} parent=5 // pred_fallthru
        _
      %p452 = scmp.le.s32.totalorder 2, %s19
      // Predicated region
      $region73: #{tpu_custom_call.1} parent=5 // pred_check
        %p453 = pneg %p452
      $region74: #{tpu_custom_call.1} parent=5 // pred_check_branch
        %455 = sbr.rel (%p453) target = $region76
      $region75: #{tpu_custom_call.1} parent=5 // pred_region
        %s456 = ssub.s32 %s19, 2
        // Predicated region
        $region77: #{tpu_custom_call.1} parent=75 // pred_check
          %p457 = pneg %p86
        $region78: #{tpu_custom_call.1} parent=75 // pred_check_branch
          %459 = sbr.rel (%p457) target = $region80
        $region79: #{tpu_custom_call.1} parent=75 // pred_region
          %s460 = sand.u32 %s71, 1
          %s461 = scalar_lea.sflag [#allocation10], %s460
          %s462 = sand.u32 %s71, 1
          %s463 = smul.addr %s462, 32
          %s464 = scalar_lea.vmem [#allocation11], %s463
          %465 = dma.done %s461, 512
        $region80: #{tpu_custom_call.1} parent=75 // pred_fallthru
          _
      $region76: #{tpu_custom_call.1} parent=5 // pred_fallthru
        _
    $region6: #{tpu_custom_call.1} parent=1 // loop_footer
      %s23 = sadd.s32 1, %s19
    $region7: #{tpu_custom_call.1} parent=1 // loop_footer_branch
      %18 = sbr.rel target = $region3
    $region8: #{tpu_custom_call.1} parent=1 // loop_exit
      _
    %466 = vsyncpa [#allocation9], 1
    %s467 = scalar_lea.sflag [#allocation9], 1
    %468 = vsyncpa %s467, 1
    %469 = vsyncpa [#allocation10], 1
    %s470 = scalar_lea.sflag [#allocation10], 1
    %471 = vsyncpa %s470, 1
  %472 = vsyncmov [#allocation5]
  %s473 = vpop.sfrf %472
  %p474 = scmp.eq.s32.totalorder %s473, 0
  %p475 = pneg %p474
  %477 = shalt.err (%p475)
  %s478 = scalar_lea.sflag [#allocation5], 1
  %479 = vsyncmov %s478
  %s480 = vpop.sfrf %479
  %p481 = scmp.eq.s32.totalorder %s480, 0
  %p482 = pneg %p481
  %484 = shalt.err (%p482)
  %s485 = scalar_lea.sflag [#allocation5], 2
  %486 = vsyncmov %s485
  %s487 = vpop.sfrf %486
  %p488 = scmp.eq.s32.totalorder %s487, 0
  %p489 = pneg %p488
  %491 = shalt.err (%p489)
  %s492 = scalar_lea.sflag [#allocation5], 3
  %493 = vsyncmov %s492
  %s494 = vpop.sfrf %493
  %p495 = scmp.eq.s32.totalorder %s494, 0
  %p496 = pneg %p495
  %498 = shalt.err (%p496)
  %s499 = scalar_lea.sflag [#allocation5], 4
  %500 = vsyncmov %s499
  %s501 = vpop.sfrf %500
  %p502 = scmp.eq.s32.totalorder %s501, 0
  %p503 = pneg %p502
  %505 = shalt.err (%p503)
  %s506 = scalar_lea.sflag [#allocation5], 5
  %507 = vsyncmov %s506
  %s508 = vpop.sfrf %507
  %p509 = scmp.eq.s32.totalorder %s508, 0
  %p510 = pneg %p509
  %512 = shalt.err (%p510)
  %s513 = scalar_lea.sflag [#allocation5], 6
  %514 = vsyncmov %s513
  %s515 = vpop.sfrf %514
  %p516 = scmp.eq.s32.totalorder %s515, 0
  %p517 = pneg %p516
  %519 = shalt.err (%p517)
  %s520 = scalar_lea.sflag [#allocation5], 7
  %521 = vsyncmov %s520
  %s522 = vpop.sfrf %521
  %p523 = scmp.eq.s32.totalorder %s522, 0
  %p524 = pneg %p523
  %526 = shalt.err (%p524)

</llo_original>
